<compile_context>
chip_gen: v7x
topology: tpu7x:2x2x1
jax: 0.10.0
libtpu: 0.0.40
codegen_flags: <defaults>
</compile_context>

<pallas_src>
import functools

import jax
import jax.numpy as jnp
from jax import lax
from jax.experimental import pallas as pl
from jax.experimental.pallas import tpu as pltpu


# ----------------------------------------------------------------------------
# Fused kernel: (grouped 1x1 -> depthwise 3x3 pad=1 -> pointwise 1x1) == one
# MXU matmul on a masked-roll im2col of x, plus a precomputed bias map.
# ----------------------------------------------------------------------------
def _convblock_kernel(x_ref, w_ref, m_ref, bmap_ref, out_ref, *, H, W, b_blk):
    HW = H * W
    LW = b_blk * HW

    # Assemble the lane-wide activation slab: images side by side on lanes.
    # Chunk width HW is a multiple of 128, so this is an aligned lane concat.
    if b_blk == 1:
        x = x_ref[0].astype(jnp.float32)                       # (Cin, HW)
    else:
        x = jnp.concatenate(
            [x_ref[b].astype(jnp.float32) for b in range(b_blk)], axis=1
        )                                                       # (Cin, LW)

    masks = m_ref[...]                                          # (8, LW) f32

    # im2col: 9 shifted views of x (XLU lane rotations); the 8 non-center taps
    # are multiplied by precomputed masks that zero both the padding=1 halo
    # and any lanes whose roll wrapped into the neighbouring image.
    taps = []
    mi = 0
    for di in (-1, 0, 1):
        for dj in (-1, 0, 1):
            if di == 0 and dj == 0:
                taps.append(x)
                continue
            s = di * W + dj
            xt = pltpu.roll(x, shift=(-s) % LW, axis=1)
            taps.append(xt * masks[mi:mi + 1])                  # (Cin, LW)
            mi += 1
    im2col = jnp.concatenate(taps, axis=0)                      # (9*Cin, LW)

    # Single fused matmul (group + depthwise + pointwise), K = 9*Cin.
    out = jnp.dot(w_ref[...], im2col, preferred_element_type=jnp.float32)
    out = out + bmap_ref[...]                                   # (Cout, LW)

    # Scatter the lane slab back to NCHW blocks (static, 128-aligned slices).
    for b in range(b_blk):
        out_ref[b] = out[:, b * HW:(b + 1) * HW].astype(out_ref.dtype)


# ----------------------------------------------------------------------------
# Parameters: weight-normalized convs (raw, PyTorch-equivalent)
# ----------------------------------------------------------------------------
def _weight_norm(v, g):
    # PyTorch weight_norm default: norm over all dims except dim 0
    n = jnp.sqrt(jnp.sum(v * v, axis=tuple(range(1, v.ndim)), keepdims=True))
    return v * (g.reshape((-1,) + (1,) * (v.ndim - 1)) / n)


def init_params(key, in_channels, out_channels, groups):
    Cin, Cout, Cg = in_channels, out_channels, in_channels // groups
    ks = jax.random.split(key, 9)

    def wn_conv(kv, kg, shape):
        v = jax.random.normal(kv, shape, jnp.float32) * 0.1
        g = 0.5 + 0.1 * jnp.abs(jax.random.normal(kg, (shape[0],), jnp.float32))
        return _weight_norm(v, g)

    w_group = wn_conv(ks[0], ks[1], (Cin, Cg, 1, 1))
    b_group = 0.05 * jax.random.normal(ks[2], (Cin,), jnp.float32)
    w_depth = wn_conv(ks[3], ks[4], (Cin, 1, 3, 3))
    b_depth = 0.05 * jax.random.normal(ks[5], (Cin,), jnp.float32)
    w_point = wn_conv(ks[6], ks[7], (Cout, Cin, 1, 1))
    b_point = 0.05 * jax.random.normal(ks[8], (Cout,), jnp.float32)
    return dict(w_group=w_group, b_group=b_group, w_depth=w_depth,
                b_depth=b_depth, w_point=w_point, b_point=b_point)


# ----------------------------------------------------------------------------
# Host-side (tiny, one-time) folding of the three convs into kernel operands
# ----------------------------------------------------------------------------
def _tensorcores_per_chip():
    """Best-effort detection; 2 for v7x-class chips, else 1."""
    try:
        kind = jax.devices()[0].device_kind.lower()
    except Exception:
        return 1
    return 2 if ("v7" in kind or "7x" in kind) else 1


def _pick_images_per_step(B, Cin, HW, min_steps):
    # Cap lane width so the f32 im2col (9*Cin, b_blk*HW) plus activation/output
    # slabs stay a few MiB (well under even v7x's default scoped VMEM), and
    # keep >= min_steps grid steps when the chip has multiple TensorCores.
    bytes_per_image = 12 * Cin * HW * 4
    cap = max(1, (8 << 20) // bytes_per_image)
    best = 1
    for d in range(1, B + 1):
        if B % d == 0 and d <= cap and (B // d) >= min(min_steps, B):
            best = d
    return best


def build_kernel_operands(p, groups, B, H, W, images_per_step=None):
    Cin = p["w_group"].shape[0]
    Cg = Cin // groups
    Cout = p["w_point"].shape[0]
    HW = H * W

    # grouped 1x1 conv -> dense block-diagonal (Cin, Cin) weight
    wg = p["w_group"][:, :, 0, 0]                                   # (Cin, Cg)
    w_group_bd = jax.scipy.linalg.block_diag(
        *[wg[g * Cg:(g + 1) * Cg] for g in range(groups)])          # (Cin, Cin)

    wd = p["w_depth"][:, 0].reshape(Cin, 9)                         # (Cin, 9), t = ki*3+kj
    wp = p["w_point"][:, :, 0, 0]                                   # (Cout, Cin)

    # depthwise + pointwise fold, then push the group conv through it:
    #   w_dp[o,t,c]  = wp[o,c] * wd[c,t]
    #   w_all[o,t,c'] = sum_c w_dp[o,t,c] * Wg_bd[c,c']
    w_dp = jnp.einsum("oc,ct->otc", wp, wd)                         # (Cout, 9, Cin)
    w_all = jnp.einsum("otc,cd->otd", w_dp, w_group_bd)
    w_all = w_all.reshape(Cout, 9 * Cin)

    # padding=1 halo masks per tap (also kill cross-image roll wrap lanes)
    pix = jnp.arange(HW)
    row = pix // W
    col = pix % W
    m9 = []
    for di in (-1, 0, 1):
        for dj in (-1, 0, 1):
            ok = ((row + di >= 0) & (row + di < H) &
                  (col + dj >= 0) & (col + dj < W))
            m9.append(ok.astype(jnp.float32))
    masks9 = jnp.stack(m9)                                          # (9, HW)
    masks8 = jnp.concatenate([masks9[:4], masks9[5:]], axis=0)      # drop center

    # bias map: b_point + W_point@b_depth + per-pixel (masked) group-bias term
    btap = jnp.einsum("otc,c->ot", w_dp, p["b_group"])              # (Cout, 9)
    b_const = p["b_point"] + wp @ p["b_depth"]                      # (Cout,)
    bias_map = b_const[:, None] + btap @ masks9                     # (Cout, HW)

    if images_per_step is None:
        images_per_step = _pick_images_per_step(
            B, Cin, HW, _tensorcores_per_chip())
    assert B % images_per_step == 0, "images_per_step must divide batch"
    b_blk = images_per_step

    return dict(
        w_all=w_all,                                   # (Cout, 9*Cin)
        masks=jnp.tile(masks8, (1, b_blk)),            # (8, b_blk*HW)
        bias_map=jnp.tile(bias_map, (1, b_blk)),       # (Cout, b_blk*HW)
        b_blk=b_blk,
    )


# ----------------------------------------------------------------------------
# Forward wrapper (NCHW in / NCHW out, like the PyTorch module)
# ----------------------------------------------------------------------------
def convblock_forward(ops, x):
    B, Cin, H, W = x.shape
    HW = H * W
    b_blk = ops["b_blk"]
    G = B // b_blk
    Cout = ops["w_all"].shape[0]
    LW = b_blk * HW

    x2 = x.reshape(B, Cin, HW)          # free reshape; dtype cast done in-kernel

    kernel = functools.partial(_convblock_kernel, H=H, W=W, b_blk=b_blk)
    out = pl.pallas_call(
        kernel,
        out_shape=jax.ShapeDtypeStruct((B, Cout, HW), jnp.float32),
        grid=(G,),
        in_specs=[
            pl.BlockSpec((b_blk, Cin, HW), lambda g: (g, 0, 0)),   # activations
            pl.BlockSpec((Cout, 9 * Cin), lambda g: (0, 0)),       # fused weight
            pl.BlockSpec((8, LW), lambda g: (0, 0)),               # halo masks
            pl.BlockSpec((Cout, LW), lambda g: (0, 0)),            # bias map
        ],
        out_specs=pl.BlockSpec((b_blk, Cout, HW), lambda g: (g, 0, 0)),
        compiler_params=pltpu.CompilerParams(
            dimension_semantics=("parallel",)),
    )(x2, ops["w_all"], ops["masks"], ops["bias_map"])
    return out.reshape(B, Cout, H, W)


# ----------------------------------------------------------------------------
# Pure-JAX reference (lax convs, unfused) for correctness check
# ----------------------------------------------------------------------------
def reference(p, x, groups):
    dn = ("NCHW", "OIHW", "NCHW")
    hp = lax.Precision.HIGHEST
    Cin = x.shape[1]
    y = lax.conv_general_dilated(x, p["w_group"], (1, 1), ((0, 0), (0, 0)),
                                 feature_group_count=groups,
                                 dimension_numbers=dn, precision=hp)
    y = y + p["b_group"].reshape(1, -1, 1, 1)
    y = lax.conv_general_dilated(y, p["w_depth"], (1, 1), ((1, 1), (1, 1)),
                                 feature_group_count=Cin,
                                 dimension_numbers=dn, precision=hp)
    y = y + p["b_depth"].reshape(1, -1, 1, 1)
    y = lax.conv_general_dilated(y, p["w_point"], (1, 1), ((0, 0), (0, 0)),
                                 dimension_numbers=dn, precision=hp)
    return y + p["b_point"].reshape(1, -1, 1, 1)


if __name__ == "__main__":
    # in_channels must be divisible by groups=3; a multiple of 8 also keeps the
    # in-kernel sublane concatenation tile-aligned.
    B, Cin, Cout, H, W, groups = 2, 24, 16, 16, 16, 3

    key = jax.random.PRNGKey(0)
    kp, kx = jax.random.split(key)
    raw = init_params(kp, Cin, Cout, groups)
    ops = build_kernel_operands(raw, groups, B, H, W)
    x = jax.random.normal(kx, (B, Cin, H, W), jnp.float32)

    out = jax.block_until_ready(convblock_forward(ops, x))
    ref = jax.block_until_ready(reference(raw, x, groups))

    assert out.shape == (B, Cout, H, W)
    assert jnp.allclose(out, ref, atol=1e-3, rtol=1e-3), "mismatch vs reference"

    print("KERNEL_OK")
</pallas_src>

<mosaic_0001>
module attributes {stable_mosaic.version = 11 : i64} {
  func.func @_convblock_kernel(%arg0: i32, %arg1: memref<2x24x256xf32, #tpu.memory_space<vmem>>, %arg2: memref<16x216xf32, #tpu.memory_space<vmem>>, %arg3: memref<8x512xf32, #tpu.memory_space<vmem>>, %arg4: memref<16x512xf32, #tpu.memory_space<vmem>>, %arg5: memref<2x16x256xf32, #tpu.memory_space<vmem>>) attributes {dimension_semantics = [#tpu.dimension_semantics<parallel>], iteration_bounds = array<i64: 1>, scalar_prefetch = 0 : i64, scratch_operands = 0 : i64, tpu.core_type = #tpu.core_type<tc>, window_params = [{transform_indices = @transform_0, window_bounds = array<i64: 2, 24, 256>}, {pipeline_mode = #tpu.pipeline_mode<synchronous>, transform_indices = @transform_1, window_bounds = array<i64: 16, 216>}, {pipeline_mode = #tpu.pipeline_mode<synchronous>, transform_indices = @transform_2, window_bounds = array<i64: 8, 512>}, {pipeline_mode = #tpu.pipeline_mode<synchronous>, transform_indices = @transform_3, window_bounds = array<i64: 16, 512>}, {transform_indices = @transform_4, window_bounds = array<i64: 2, 16, 256>}]} {
    %c0 = arith.constant 0 : index
    %c0_0 = arith.constant 0 : index
    %c0_1 = arith.constant 0 : index
    %0 = vector.load %arg1[%c0, %c0_0, %c0_1] : memref<2x24x256xf32, #tpu.memory_space<vmem>>, vector<1x24x256xf32>
    %1 = vector.shape_cast %0 : vector<1x24x256xf32> to vector<24x256xf32>
    %c1 = arith.constant 1 : index
    %c0_2 = arith.constant 0 : index
    %c0_3 = arith.constant 0 : index
    %2 = vector.load %arg1[%c1, %c0_2, %c0_3] : memref<2x24x256xf32, #tpu.memory_space<vmem>>, vector<1x24x256xf32>
    %3 = vector.shape_cast %2 : vector<1x24x256xf32> to vector<24x256xf32>
    %4 = tpu.concatenate %1, %3 in 1 : vector<24x256xf32>, vector<24x256xf32> -> vector<24x512xf32>
    %c0_4 = arith.constant 0 : index
    %c0_5 = arith.constant 0 : index
    %5 = vector.load %arg3[%c0_4, %c0_5] : memref<8x512xf32, #tpu.memory_space<vmem>>, vector<8x512xf32>
    %c17_i32 = arith.constant 17 : i32
    %6 = tpu.dynamic_rotate %4 by %c17_i32 dim 1 : vector<24x512xf32>, i32 -> vector<24x512xf32>
    %7 = vector.extract_strided_slice %5 {offsets = [0, 0], sizes = [1, 512], strides = [1, 1]} : vector<8x512xf32> to vector<1x512xf32>
    %8 = vector.broadcast %7 : vector<1x512xf32> to vector<24x512xf32>
    %9 = arith.mulf %6, %8 : vector<24x512xf32>
    %c16_i32 = arith.constant 16 : i32
    %10 = tpu.dynamic_rotate %4 by %c16_i32 dim 1 : vector<24x512xf32>, i32 -> vector<24x512xf32>
    %11 = vector.extract_strided_slice %5 {offsets = [1, 0], sizes = [1, 512], strides = [1, 1]} : vector<8x512xf32> to vector<1x512xf32>
    %12 = vector.broadcast %11 : vector<1x512xf32> to vector<24x512xf32>
    %13 = arith.mulf %10, %12 : vector<24x512xf32>
    %c15_i32 = arith.constant 15 : i32
    %14 = tpu.dynamic_rotate %4 by %c15_i32 dim 1 : vector<24x512xf32>, i32 -> vector<24x512xf32>
    %15 = vector.extract_strided_slice %5 {offsets = [2, 0], sizes = [1, 512], strides = [1, 1]} : vector<8x512xf32> to vector<1x512xf32>
    %16 = vector.broadcast %15 : vector<1x512xf32> to vector<24x512xf32>
    %17 = arith.mulf %14, %16 : vector<24x512xf32>
    %c1_i32 = arith.constant 1 : i32
    %18 = tpu.dynamic_rotate %4 by %c1_i32 dim 1 : vector<24x512xf32>, i32 -> vector<24x512xf32>
    %19 = vector.extract_strided_slice %5 {offsets = [3, 0], sizes = [1, 512], strides = [1, 1]} : vector<8x512xf32> to vector<1x512xf32>
    %20 = vector.broadcast %19 : vector<1x512xf32> to vector<24x512xf32>
    %21 = arith.mulf %18, %20 : vector<24x512xf32>
    %c511_i32 = arith.constant 511 : i32
    %22 = tpu.dynamic_rotate %4 by %c511_i32 dim 1 : vector<24x512xf32>, i32 -> vector<24x512xf32>
    %23 = vector.extract_strided_slice %5 {offsets = [4, 0], sizes = [1, 512], strides = [1, 1]} : vector<8x512xf32> to vector<1x512xf32>
    %24 = vector.broadcast %23 : vector<1x512xf32> to vector<24x512xf32>
    %25 = arith.mulf %22, %24 : vector<24x512xf32>
    %c497_i32 = arith.constant 497 : i32
    %26 = tpu.dynamic_rotate %4 by %c497_i32 dim 1 : vector<24x512xf32>, i32 -> vector<24x512xf32>
    %27 = vector.extract_strided_slice %5 {offsets = [5, 0], sizes = [1, 512], strides = [1, 1]} : vector<8x512xf32> to vector<1x512xf32>
    %28 = vector.broadcast %27 : vector<1x512xf32> to vector<24x512xf32>
    %29 = arith.mulf %26, %28 : vector<24x512xf32>
    %c496_i32 = arith.constant 496 : i32
    %30 = tpu.dynamic_rotate %4 by %c496_i32 dim 1 : vector<24x512xf32>, i32 -> vector<24x512xf32>
    %31 = vector.extract_strided_slice %5 {offsets = [6, 0], sizes = [1, 512], strides = [1, 1]} : vector<8x512xf32> to vector<1x512xf32>
    %32 = vector.broadcast %31 : vector<1x512xf32> to vector<24x512xf32>
    %33 = arith.mulf %30, %32 : vector<24x512xf32>
    %c495_i32 = arith.constant 495 : i32
    %34 = tpu.dynamic_rotate %4 by %c495_i32 dim 1 : vector<24x512xf32>, i32 -> vector<24x512xf32>
    %35 = vector.extract_strided_slice %5 {offsets = [7, 0], sizes = [1, 512], strides = [1, 1]} : vector<8x512xf32> to vector<1x512xf32>
    %36 = vector.broadcast %35 : vector<1x512xf32> to vector<24x512xf32>
    %37 = arith.mulf %34, %36 : vector<24x512xf32>
    %38 = tpu.concatenate %9, %13, %17, %21, %4, %25, %29, %33, %37 in 0 : vector<24x512xf32>, vector<24x512xf32>, vector<24x512xf32>, vector<24x512xf32>, vector<24x512xf32>, vector<24x512xf32>, vector<24x512xf32>, vector<24x512xf32>, vector<24x512xf32> -> vector<216x512xf32>
    %c0_6 = arith.constant 0 : index
    %c0_7 = arith.constant 0 : index
    %39 = vector.load %arg2[%c0_6, %c0_7] : memref<16x216xf32, #tpu.memory_space<vmem>>, vector<16x216xf32>
    %cst = arith.constant dense<0.000000e+00> : vector<16x512xf32>
    %40 = tpu.matmul %39, %38, %cst {dimension_numbers = #tpu.dot_dimension_numbers<[1], [0], [0], [1], [0, 0, 1, 1], [], []>} : vector<16x216xf32>, vector<216x512xf32>, vector<16x512xf32> -> vector<16x512xf32>
    %c0_8 = arith.constant 0 : index
    %c0_9 = arith.constant 0 : index
    %41 = vector.load %arg4[%c0_8, %c0_9] : memref<16x512xf32, #tpu.memory_space<vmem>>, vector<16x512xf32>
    %42 = arith.addf %40, %41 : vector<16x512xf32>
    %43 = vector.extract_strided_slice %42 {offsets = [0, 0], sizes = [16, 256], strides = [1, 1]} : vector<16x512xf32> to vector<16x256xf32>
    %c0_10 = arith.constant 0 : index
    %c0_11 = arith.constant 0 : index
    %c0_12 = arith.constant 0 : index
    %44 = vector.load %arg5[%c0_10, %c0_11, %c0_12] : memref<2x16x256xf32, #tpu.memory_space<vmem>>, vector<1x16x256xf32>
    %45 = vector.shape_cast %44 : vector<1x16x256xf32> to vector<16x256xf32>
    %46 = vector.shape_cast %43 : vector<16x256xf32> to vector<1x16x256xf32>
    tpu.vector_store %arg5[%c0_10, %c0_11, %c0_12], %46 {strides = array<i32>} : memref<2x16x256xf32, #tpu.memory_space<vmem>>, vector<1x16x256xf32>,
    %47 = vector.extract_strided_slice %42 {offsets = [0, 256], sizes = [16, 256], strides = [1, 1]} : vector<16x512xf32> to vector<16x256xf32>
    %c1_13 = arith.constant 1 : index
    %c0_14 = arith.constant 0 : index
    %c0_15 = arith.constant 0 : index
    %48 = vector.load %arg5[%c1_13, %c0_14, %c0_15] : memref<2x16x256xf32, #tpu.memory_space<vmem>>, vector<1x16x256xf32>
    %49 = vector.shape_cast %48 : vector<1x16x256xf32> to vector<16x256xf32>
    %50 = vector.shape_cast %47 : vector<16x256xf32> to vector<1x16x256xf32>
    tpu.vector_store %arg5[%c1_13, %c0_14, %c0_15], %50 {strides = array<i32>} : memref<2x16x256xf32, #tpu.memory_space<vmem>>, vector<1x16x256xf32>,
    return
  }
  func.func @transform_0(%arg0: i32) -> (i32, i32, i32) {
    %c0_i32 = arith.constant 0 : i32
    %c0_i32_0 = arith.constant 0 : i32
    %c0_i32_1 = arith.constant 0 : i32
    return %arg0, %c0_i32, %c0_i32_0 : i32, i32, i32
  }
  func.func @transform_1(%arg0: i32) -> (i32, i32) {
    %c0_i32 = arith.constant 0 : i32
    %c0_i32_0 = arith.constant 0 : i32
    %c0_i32_1 = arith.constant 0 : i32
    return %c0_i32, %c0_i32_0 : i32, i32
  }
  func.func @transform_2(%arg0: i32) -> (i32, i32) {
    %c0_i32 = arith.constant 0 : i32
    %c0_i32_0 = arith.constant 0 : i32
    %c0_i32_1 = arith.constant 0 : i32
    return %c0_i32, %c0_i32_0 : i32, i32
  }
  func.func @transform_3(%arg0: i32) -> (i32, i32) {
    %c0_i32 = arith.constant 0 : i32
    %c0_i32_0 = arith.constant 0 : i32
    %c0_i32_1 = arith.constant 0 : i32
    return %c0_i32, %c0_i32_0 : i32, i32
  }
  func.func @transform_4(%arg0: i32) -> (i32, i32, i32) {
    %c0_i32 = arith.constant 0 : i32
    %c0_i32_0 = arith.constant 0 : i32
    %c0_i32_1 = arith.constant 0 : i32
    return %arg0, %c0_i32, %c0_i32_0 : i32, i32, i32
  }
}

</mosaic_0001>

<llo_original>
// kernel: tpu_custom_call.1
$region0: #{tpu_custom_call.1}
  #allocation0 [shape = 'u32[]', space=smem, size = 0x4, offset = 0x4, fixed_abs, tag = 'smem constant byte address 0x4 - core index']
  #allocation1 [shape = 'u32[144,128]{1,0:T(1,128)}', space=vmem, size = 0x12000, scoped, tag = 'internal scratch']
  %s0 = inlined_call_operand.hbm [shape: f32[2,24,256], index: 0, kind: input, shape index: {}]
  %s1 = inlined_call_operand.hbm [shape: f32[16,216], index: 1, kind: input, shape index: {}]
  %s2 = inlined_call_operand.hbm [shape: f32[8,512], index: 2, kind: input, shape index: {}]
  %s3 = inlined_call_operand.hbm [shape: f32[16,512], index: 3, kind: input, shape index: {}]
  %s4 = inlined_call_operand.hbm [shape: f32[2,16,256], index: 4, kind: output, shape index: {}]
  %s5 = sld [smem:[#allocation0]]
  $region42: #{tpu_custom_call.1} parent=0
    _
  %s7 = ssub.s32 1, %s5
  %s8 = scalar_select 0, %s7, %s5
  $region1: #{tpu_custom_call.1} parent=0
    #allocation2 [shape = 'u8[49152]{0}', space=vmem, size = 0xc000, scoped, tag = 'input window, operand 0, single buffered']
    #allocation3 [shape = 's32[1]{0}', space=sflag, size = 0x4, scoped, tag = 'scoped memory for tpu_custom_call.1']
    #allocation4 [shape = 's32[1]{0}', space=sflag, size = 0x4, scoped, tag = 'scoped memory for tpu_custom_call.1']
    #allocation5 [shape = 'u8[16384]{0}', space=vmem, size = 0x4000, scoped, tag = 'input window, operand 1, single buffered']
    #allocation6 [shape = 's32[1]{0}', space=sflag, size = 0x4, scoped, tag = 'scoped memory for tpu_custom_call.1']
    #allocation7 [shape = 'u8[16384]{0}', space=vmem, size = 0x4000, scoped, tag = 'input window, operand 2, single buffered']
    #allocation8 [shape = 'u8[32768]{0}', space=vmem, size = 0x8000, scoped, tag = 'input window, operand 3, single buffered']
    #allocation9 [shape = 's32[1]{0}', space=sflag, size = 0x4, scoped, tag = 'scoped memory for tpu_custom_call.1']
    #allocation10 [shape = 'u8[32768]{0}', space=vmem, size = 0x8000, scoped, tag = 'output window, operand 0, single buffered']
    %9 = vsyncpa [#allocation3], 0
    %10 = vsyncpa [#allocation6], 0
    %11 = vsyncpa [#allocation9], 0
    %12 = vsyncpa [#allocation4], 0
    // Predicated region
    $region2: #{tpu_custom_call.1} parent=1 // pred_check
      _
    $region3: #{tpu_custom_call.1} parent=1 // pred_check_branch
      %14 = sbr.rel (0) target = $region5
    $region4: #{tpu_custom_call.1} parent=1 // pred_region
      %s16 = ssub.s32 1536, 1536
      %17 = vsyncadd [#allocation3], %s16
      %s18 = sshll.u32 [#allocation2], 4
      %s19 = int_to_ptr.vmem [resolvable:$true] %s18
      %24 = dma.hbm_to_vmem [thread:$0]  %s0, 1536, %s19, [#allocation3], 256, 256, 16
    $region5: #{tpu_custom_call.1} parent=1 // pred_fallthru
      _
    // Predicated region
    $region6: #{tpu_custom_call.1} parent=1 // pred_check
      _
    $region7: #{tpu_custom_call.1} parent=1 // pred_check_branch
      %26 = sbr.rel (0) target = $region9
    $region8: #{tpu_custom_call.1} parent=1 // pred_region
      %s28 = ssub.s32 512, 512
      %29 = vsyncadd [#allocation6], %s28
      %s30 = sshll.u32 [#allocation5], 4
      %s31 = int_to_ptr.vmem [resolvable:$true] %s30
      %36 = dma.hbm_to_vmem [thread:$0]  %s1, 512, %s31, [#allocation6], 256, 256, 16
    $region9: #{tpu_custom_call.1} parent=1 // pred_fallthru
      _
    // Predicated region
    $region10: #{tpu_custom_call.1} parent=1 // pred_check
      _
    $region11: #{tpu_custom_call.1} parent=1 // pred_check_branch
      %38 = sbr.rel (0) target = $region13
    $region12: #{tpu_custom_call.1} parent=1 // pred_region
      %s40 = ssub.s32 512, 512
      %41 = vsyncadd [#allocation6], %s40
      %s43 = sshll.u32 [#allocation7], 4
      %s44 = int_to_ptr.vmem [resolvable:$true] %s43
      %46 = dma.hbm_to_vmem [thread:$0]  %s2, 512, %s44, [#allocation6]
    $region13: #{tpu_custom_call.1} parent=1 // pred_fallthru
      _
    // Predicated region
    $region14: #{tpu_custom_call.1} parent=1 // pred_check
      _
    $region15: #{tpu_custom_call.1} parent=1 // pred_check_branch
      %48 = sbr.rel (0) target = $region17
    $region16: #{tpu_custom_call.1} parent=1 // pred_region
      %s50 = ssub.s32 1024, 1024
      %51 = vsyncadd [#allocation9], %s50
      %s52 = sshll.u32 [#allocation8], 4
      %s53 = int_to_ptr.vmem [resolvable:$true] %s52
      %58 = dma.hbm_to_vmem [thread:$0]  %s3, 1024, %s53, [#allocation9], 512, 512, 32
    $region17: #{tpu_custom_call.1} parent=1 // pred_fallthru
      _
    // Predicated region
    $region18: #{tpu_custom_call.1} parent=1 // pred_check
      _
    $region19: #{tpu_custom_call.1} parent=1 // pred_check_branch
      %60 = sbr.rel (0) target = $region21
    $region20: #{tpu_custom_call.1} parent=1 // pred_region
      %61 = dma.done [#allocation3], 1536
    $region21: #{tpu_custom_call.1} parent=1 // pred_fallthru
      _
    // Predicated region
    $region22: #{tpu_custom_call.1} parent=1 // pred_check
      _
    $region23: #{tpu_custom_call.1} parent=1 // pred_check_branch
      %63 = sbr.rel (0) target = $region25
    $region24: #{tpu_custom_call.1} parent=1 // pred_region
      %64 = dma.done [#allocation6], 512
    $region25: #{tpu_custom_call.1} parent=1 // pred_fallthru
      _
    // Predicated region
    $region26: #{tpu_custom_call.1} parent=1 // pred_check
      _
    $region27: #{tpu_custom_call.1} parent=1 // pred_check_branch
      %66 = sbr.rel (0) target = $region29
    $region28: #{tpu_custom_call.1} parent=1 // pred_region
      %67 = dma.done [#allocation6], 512
    $region29: #{tpu_custom_call.1} parent=1 // pred_fallthru
      _
    // Predicated region
    $region30: #{tpu_custom_call.1} parent=1 // pred_check
      _
    $region31: #{tpu_custom_call.1} parent=1 // pred_check_branch
      %69 = sbr.rel (0) target = $region33
    $region32: #{tpu_custom_call.1} parent=1 // pred_region
      %70 = dma.done [#allocation9], 1024
    $region33: #{tpu_custom_call.1} parent=1 // pred_fallthru
      _
    %v71 = vld [vmem:[#allocation2] sm:$0xff]
    %v72 = vld [vmem:[#allocation2 + $0x8] sm:$0xff]
    %v73 = vld [vmem:[#allocation2 + $0x10] sm:$0xff]
    %v74 = vld [vmem:[#allocation2 + $0x18] sm:$0xff]
    %v75 = vld [vmem:[#allocation2 + $0x20] sm:$0xff]
    %v76 = vld [vmem:[#allocation2 + $0x28] sm:$0xff]
    %s77 = scalar_lea.vmem [#allocation2], 48
    %v78 = vld [vmem:[%s77] sm:$0xff]
    %v79 = vld [vmem:[%s77 + $0x8] sm:$0xff]
    %v80 = vld [vmem:[%s77 + $0x10] sm:$0xff]
    %v81 = vld [vmem:[%s77 + $0x18] sm:$0xff]
    %v82 = vld [vmem:[%s77 + $0x20] sm:$0xff]
    %v83 = vld [vmem:[%s77 + $0x28] sm:$0xff]
    %v84 = vld [vmem:[#allocation7] sm:$0xff]
    %v85 = vld [vmem:[#allocation7 + $0x8] sm:$0xff]
    %v86 = vld [vmem:[#allocation7 + $0x10] sm:$0xff]
    %v87 = vld [vmem:[#allocation7 + $0x18] sm:$0xff]
    %88 = vrot.lane.b32.xlu0 %v71, 17
    %v89 = vpop.permute.xlu0 %88
    %90 = vrot.lane.b32.xlu0 %v73, 17
    %v91 = vpop.permute.xlu0 %90
    %92 = vrot.lane.b32.xlu0 %v75, 17
    %v93 = vpop.permute.xlu0 %92
    %94 = vrot.lane.b32.xlu0 %v72, 17
    %v95 = vpop.permute.xlu0 %94
    %96 = vrot.lane.b32.xlu0 %v74, 17
    %v97 = vpop.permute.xlu0 %96
    %98 = vrot.lane.b32.xlu0 %v76, 17
    %v99 = vpop.permute.xlu0 %98
    %100 = vrot.lane.b32.xlu0 %v78, 17
    %v101 = vpop.permute.xlu0 %100
    %102 = vrot.lane.b32.xlu0 %v80, 17
    %v103 = vpop.permute.xlu0 %102
    %104 = vrot.lane.b32.xlu0 %v82, 17
    %v105 = vpop.permute.xlu0 %104
    %106 = vrot.lane.b32.xlu0 %v79, 17
    %v107 = vpop.permute.xlu0 %106
    %108 = vrot.lane.b32.xlu0 %v81, 17
    %v109 = vpop.permute.xlu0 %108
    %110 = vrot.lane.b32.xlu0 %v83, 17
    %v111 = vpop.permute.xlu0 %110
    %v112 = vlaneseq
    %v113 = vand.u32 %v112, 127
    %vm114 = vcmp.lt.s32.totalorder %v113, 17
    %v115 = vsel %vm114, %v101, %v107
    %v116 = vsel %vm114, %v103, %v109
    %v117 = vsel %vm114, %v105, %v111
    %v118 = vsel %vm114, %v95, %v101
    %v119 = vsel %vm114, %v97, %v103
    %v120 = vsel %vm114, %v99, %v105
    %v121 = vsel %vm114, %v89, %v95
    %v122 = vsel %vm114, %v91, %v97
    %v123 = vsel %vm114, %v93, %v99
    %v124 = vsel %vm114, %v107, %v89
    %v125 = vsel %vm114, %v109, %v91
    %v126 = vsel %vm114, %v111, %v93
    %v127 = vlaneseq
    %v128 = vshrl.u32 %v127, 7
    %v129 = vsub.s32 0, %v128
    %v130 = vrot.slane %v84, %v129
    %v131 = vlaneseq
    %v132 = vshrl.u32 %v131, 7
    %v133 = vsub.s32 0, %v132
    %v134 = vrot.slane %v85, %v133
    %v135 = vlaneseq
    %v136 = vshrl.u32 %v135, 7
    %v137 = vsub.s32 0, %v136
    %v138 = vrot.slane %v86, %v137
    %v139 = vlaneseq
    %v140 = vshrl.u32 %v139, 7
    %v141 = vsub.s32 0, %v140
    %v142 = vrot.slane %v87, %v141
    %v143 = vmul.f32 %v124, %v130
    %v144 = vmul.f32 %v121, %v134
    %v145 = vmul.f32 %v118, %v138
    %v146 = vmul.f32 %v115, %v142
    %v147 = vmul.f32 %v125, %v130
    %v148 = vmul.f32 %v122, %v134
    %v149 = vmul.f32 %v119, %v138
    %v150 = vmul.f32 %v116, %v142
    %v151 = vmul.f32 %v126, %v130
    %v152 = vmul.f32 %v123, %v134
    %v153 = vmul.f32 %v120, %v138
    %v154 = vmul.f32 %v117, %v142
    %155 = vrot.lane.b32.xlu0 %v71, 16
    %v156 = vpop.permute.xlu0 %155
    %157 = vrot.lane.b32.xlu0 %v73, 16
    %v158 = vpop.permute.xlu0 %157
    %159 = vrot.lane.b32.xlu0 %v75, 16
    %v160 = vpop.permute.xlu0 %159
    %161 = vrot.lane.b32.xlu0 %v72, 16
    %v162 = vpop.permute.xlu0 %161
    %163 = vrot.lane.b32.xlu0 %v74, 16
    %v164 = vpop.permute.xlu0 %163
    %165 = vrot.lane.b32.xlu0 %v76, 16
    %v166 = vpop.permute.xlu0 %165
    %167 = vrot.lane.b32.xlu0 %v78, 16
    %v168 = vpop.permute.xlu0 %167
    %169 = vrot.lane.b32.xlu0 %v80, 16
    %v170 = vpop.permute.xlu0 %169
    %171 = vrot.lane.b32.xlu0 %v82, 16
    %v172 = vpop.permute.xlu0 %171
    %173 = vrot.lane.b32.xlu0 %v79, 16
    %v174 = vpop.permute.xlu0 %173
    %175 = vrot.lane.b32.xlu0 %v81, 16
    %v176 = vpop.permute.xlu0 %175
    %177 = vrot.lane.b32.xlu0 %v83, 16
    %v178 = vpop.permute.xlu0 %177
    %vm179 = vcmp.lt.s32.totalorder %v113, 16
    %v180 = vsel %vm179, %v168, %v174
    %v181 = vsel %vm179, %v170, %v176
    %v182 = vsel %vm179, %v172, %v178
    %v183 = vsel %vm179, %v162, %v168
    %v184 = vsel %vm179, %v164, %v170
    %v185 = vsel %vm179, %v166, %v172
    %v186 = vsel %vm179, %v156, %v162
    %v187 = vsel %vm179, %v158, %v164
    %v188 = vsel %vm179, %v160, %v166
    %v189 = vsel %vm179, %v174, %v156
    %v190 = vsel %vm179, %v176, %v158
    %v191 = vsel %vm179, %v178, %v160
    %v192 = vlaneseq
    %v193 = vshrl.u32 %v192, 7
    %v194 = vsub.s32 1, %v193
    %v195 = vrot.slane %v84, %v194
    %v196 = vlaneseq
    %v197 = vshrl.u32 %v196, 7
    %v198 = vsub.s32 1, %v197
    %v199 = vrot.slane %v85, %v198
    %v200 = vlaneseq
    %v201 = vshrl.u32 %v200, 7
    %v202 = vsub.s32 1, %v201
    %v203 = vrot.slane %v86, %v202
    %v204 = vlaneseq
    %v205 = vshrl.u32 %v204, 7
    %v206 = vsub.s32 1, %v205
    %v207 = vrot.slane %v87, %v206
    %v208 = vmul.f32 %v189, %v195
    %v209 = vmul.f32 %v186, %v199
    %v210 = vmul.f32 %v183, %v203
    %v211 = vmul.f32 %v180, %v207
    %v212 = vmul.f32 %v190, %v195
    %v213 = vmul.f32 %v187, %v199
    %v214 = vmul.f32 %v184, %v203
    %v215 = vmul.f32 %v181, %v207
    %v216 = vmul.f32 %v191, %v195
    %v217 = vmul.f32 %v188, %v199
    %v218 = vmul.f32 %v185, %v203
    %v219 = vmul.f32 %v182, %v207
    %220 = vrot.lane.b32.xlu0 %v71, 15
    %v221 = vpop.permute.xlu0 %220
    %222 = vrot.lane.b32.xlu0 %v73, 15
    %v223 = vpop.permute.xlu0 %222
    %224 = vrot.lane.b32.xlu0 %v75, 15
    %v225 = vpop.permute.xlu0 %224
    %226 = vrot.lane.b32.xlu0 %v72, 15
    %v227 = vpop.permute.xlu0 %226
    %228 = vrot.lane.b32.xlu0 %v74, 15
    %v229 = vpop.permute.xlu0 %228
    %230 = vrot.lane.b32.xlu0 %v76, 15
    %v231 = vpop.permute.xlu0 %230
    %232 = vrot.lane.b32.xlu0 %v78, 15
    %v233 = vpop.permute.xlu0 %232
    %234 = vrot.lane.b32.xlu0 %v80, 15
    %v235 = vpop.permute.xlu0 %234
    %236 = vrot.lane.b32.xlu0 %v82, 15
    %v237 = vpop.permute.xlu0 %236
    %238 = vrot.lane.b32.xlu0 %v79, 15
    %v239 = vpop.permute.xlu0 %238
    %240 = vrot.lane.b32.xlu0 %v81, 15
    %v241 = vpop.permute.xlu0 %240
    %242 = vrot.lane.b32.xlu0 %v83, 15
    %v243 = vpop.permute.xlu0 %242
    %vm244 = vcmp.lt.s32.totalorder %v113, 15
    %v245 = vsel %vm244, %v233, %v239
    %v246 = vsel %vm244, %v235, %v241
    %v247 = vsel %vm244, %v237, %v243
    %v248 = vsel %vm244, %v227, %v233
    %v249 = vsel %vm244, %v229, %v235
    %v250 = vsel %vm244, %v231, %v237
    %v251 = vsel %vm244, %v221, %v227
    %v252 = vsel %vm244, %v223, %v229
    %v253 = vsel %vm244, %v225, %v231
    %v254 = vsel %vm244, %v239, %v221
    %v255 = vsel %vm244, %v241, %v223
    %v256 = vsel %vm244, %v243, %v225
    %v257 = vlaneseq
    %v258 = vshrl.u32 %v257, 7
    %v259 = vsub.s32 2, %v258
    %v260 = vrot.slane %v84, %v259
    %v261 = vlaneseq
    %v262 = vshrl.u32 %v261, 7
    %v263 = vsub.s32 2, %v262
    %v264 = vrot.slane %v85, %v263
    %v265 = vlaneseq
    %v266 = vshrl.u32 %v265, 7
    %v267 = vsub.s32 2, %v266
    %v268 = vrot.slane %v86, %v267
    %v269 = vlaneseq
    %v270 = vshrl.u32 %v269, 7
    %v271 = vsub.s32 2, %v270
    %v272 = vrot.slane %v87, %v271
    %v273 = vmul.f32 %v254, %v260
    %v274 = vmul.f32 %v251, %v264
    %v275 = vmul.f32 %v248, %v268
    %v276 = vmul.f32 %v245, %v272
    %v277 = vmul.f32 %v255, %v260
    %v278 = vmul.f32 %v252, %v264
    %v279 = vmul.f32 %v249, %v268
    %v280 = vmul.f32 %v246, %v272
    %v281 = vmul.f32 %v256, %v260
    %v282 = vmul.f32 %v253, %v264
    %v283 = vmul.f32 %v250, %v268
    %v284 = vmul.f32 %v247, %v272
    %285 = vrot.lane.b32.xlu0 %v71, 1
    %v286 = vpop.permute.xlu0 %285
    %287 = vrot.lane.b32.xlu0 %v73, 1
    %v288 = vpop.permute.xlu0 %287
    %289 = vrot.lane.b32.xlu0 %v75, 1
    %v290 = vpop.permute.xlu0 %289
    %291 = vrot.lane.b32.xlu0 %v72, 1
    %v292 = vpop.permute.xlu0 %291
    %293 = vrot.lane.b32.xlu0 %v74, 1
    %v294 = vpop.permute.xlu0 %293
    %295 = vrot.lane.b32.xlu0 %v76, 1
    %v296 = vpop.permute.xlu0 %295
    %297 = vrot.lane.b32.xlu0 %v78, 1
    %v298 = vpop.permute.xlu0 %297
    %299 = vrot.lane.b32.xlu0 %v80, 1
    %v300 = vpop.permute.xlu0 %299
    %301 = vrot.lane.b32.xlu0 %v82, 1
    %v302 = vpop.permute.xlu0 %301
    %303 = vrot.lane.b32.xlu0 %v79, 1
    %v304 = vpop.permute.xlu0 %303
    %305 = vrot.lane.b32.xlu0 %v81, 1
    %v306 = vpop.permute.xlu0 %305
    %307 = vrot.lane.b32.xlu0 %v83, 1
    %v308 = vpop.permute.xlu0 %307
    %vm309 = vcmp.lt.s32.totalorder %v113, 1
    %v310 = vsel %vm309, %v298, %v304
    %v311 = vsel %vm309, %v300, %v306
    %v312 = vsel %vm309, %v302, %v308
    %v313 = vsel %vm309, %v292, %v298
    %v314 = vsel %vm309, %v294, %v300
    %v315 = vsel %vm309, %v296, %v302
    %v316 = vsel %vm309, %v286, %v292
    %v317 = vsel %vm309, %v288, %v294
    %v318 = vsel %vm309, %v290, %v296
    %v319 = vsel %vm309, %v304, %v286
    %v320 = vsel %vm309, %v306, %v288
    %v321 = vsel %vm309, %v308, %v290
    %v322 = vlaneseq
    %v323 = vshrl.u32 %v322, 7
    %v324 = vsub.s32 3, %v323
    %v325 = vrot.slane %v84, %v324
    %v326 = vlaneseq
    %v327 = vshrl.u32 %v326, 7
    %v328 = vsub.s32 3, %v327
    %v329 = vrot.slane %v85, %v328
    %v330 = vlaneseq
    %v331 = vshrl.u32 %v330, 7
    %v332 = vsub.s32 3, %v331
    %v333 = vrot.slane %v86, %v332
    %v334 = vlaneseq
    %v335 = vshrl.u32 %v334, 7
    %v336 = vsub.s32 3, %v335
    %v337 = vrot.slane %v87, %v336
    %v338 = vmul.f32 %v319, %v325
    %v339 = vmul.f32 %v316, %v329
    %v340 = vmul.f32 %v313, %v333
    %v341 = vmul.f32 %v310, %v337
    %v342 = vmul.f32 %v320, %v325
    %v343 = vmul.f32 %v317, %v329
    %v344 = vmul.f32 %v314, %v333
    %v345 = vmul.f32 %v311, %v337
    %v346 = vmul.f32 %v321, %v325
    %v347 = vmul.f32 %v318, %v329
    %v348 = vmul.f32 %v315, %v333
    %v349 = vmul.f32 %v312, %v337
    %350 = vrot.lane.b32.xlu0 %v71, 127
    %v351 = vpop.permute.xlu0 %350
    %352 = vrot.lane.b32.xlu0 %v73, 127
    %v353 = vpop.permute.xlu0 %352
    %354 = vrot.lane.b32.xlu0 %v75, 127
    %v355 = vpop.permute.xlu0 %354
    %356 = vrot.lane.b32.xlu0 %v72, 127
    %v357 = vpop.permute.xlu0 %356
    %358 = vrot.lane.b32.xlu0 %v74, 127
    %v359 = vpop.permute.xlu0 %358
    %360 = vrot.lane.b32.xlu0 %v76, 127
    %v361 = vpop.permute.xlu0 %360
    %362 = vrot.lane.b32.xlu0 %v78, 127
    %v363 = vpop.permute.xlu0 %362
    %364 = vrot.lane.b32.xlu0 %v80, 127
    %v365 = vpop.permute.xlu0 %364
    %366 = vrot.lane.b32.xlu0 %v82, 127
    %v367 = vpop.permute.xlu0 %366
    %368 = vrot.lane.b32.xlu0 %v79, 127
    %v369 = vpop.permute.xlu0 %368
    %370 = vrot.lane.b32.xlu0 %v81, 127
    %v371 = vpop.permute.xlu0 %370
    %372 = vrot.lane.b32.xlu0 %v83, 127
    %v373 = vpop.permute.xlu0 %372
    %vm374 = vcmp.lt.s32.totalorder %v113, 127
    %v375 = vsel %vm374, %v363, %v369
    %v376 = vsel %vm374, %v365, %v371
    %v377 = vsel %vm374, %v367, %v373
    %v378 = vsel %vm374, %v357, %v363
    %v379 = vsel %vm374, %v359, %v365
    %v380 = vsel %vm374, %v361, %v367
    %v381 = vsel %vm374, %v351, %v357
    %v382 = vsel %vm374, %v353, %v359
    %v383 = vsel %vm374, %v355, %v361
    %v384 = vsel %vm374, %v369, %v351
    %v385 = vsel %vm374, %v371, %v353
    %v386 = vsel %vm374, %v373, %v355
    %v387 = vlaneseq
    %v388 = vshrl.u32 %v387, 7
    %v389 = vsub.s32 4, %v388
    %v390 = vrot.slane %v84, %v389
    %v391 = vlaneseq
    %v392 = vshrl.u32 %v391, 7
    %v393 = vsub.s32 4, %v392
    %v394 = vrot.slane %v85, %v393
    %v395 = vlaneseq
    %v396 = vshrl.u32 %v395, 7
    %v397 = vsub.s32 4, %v396
    %v398 = vrot.slane %v86, %v397
    %v399 = vlaneseq
    %v400 = vshrl.u32 %v399, 7
    %v401 = vsub.s32 4, %v400
    %v402 = vrot.slane %v87, %v401
    %v403 = vmul.f32 %v381, %v390
    %v404 = vmul.f32 %v378, %v394
    %v405 = vmul.f32 %v375, %v398
    %v406 = vmul.f32 %v384, %v402
    %v407 = vmul.f32 %v382, %v390
    %v408 = vmul.f32 %v379, %v394
    %v409 = vmul.f32 %v376, %v398
    %v410 = vmul.f32 %v385, %v402
    %v411 = vmul.f32 %v383, %v390
    %v412 = vmul.f32 %v380, %v394
    %v413 = vmul.f32 %v377, %v398
    %v414 = vmul.f32 %v386, %v402
    %415 = vrot.lane.b32.xlu0 %v71, 113
    %v416 = vpop.permute.xlu0 %415
    %417 = vrot.lane.b32.xlu0 %v73, 113
    %v418 = vpop.permute.xlu0 %417
    %419 = vrot.lane.b32.xlu0 %v75, 113
    %v420 = vpop.permute.xlu0 %419
    %421 = vrot.lane.b32.xlu0 %v72, 113
    %v422 = vpop.permute.xlu0 %421
    %423 = vrot.lane.b32.xlu0 %v74, 113
    %v424 = vpop.permute.xlu0 %423
    %425 = vrot.lane.b32.xlu0 %v76, 113
    %v426 = vpop.permute.xlu0 %425
    %427 = vrot.lane.b32.xlu0 %v78, 113
    %v428 = vpop.permute.xlu0 %427
    %429 = vrot.lane.b32.xlu0 %v80, 113
    %v430 = vpop.permute.xlu0 %429
    %431 = vrot.lane.b32.xlu0 %v82, 113
    %v432 = vpop.permute.xlu0 %431
    %433 = vrot.lane.b32.xlu0 %v79, 113
    %v434 = vpop.permute.xlu0 %433
    %435 = vrot.lane.b32.xlu0 %v81, 113
    %v436 = vpop.permute.xlu0 %435
    %437 = vrot.lane.b32.xlu0 %v83, 113
    %v438 = vpop.permute.xlu0 %437
    %vm439 = vcmp.lt.s32.totalorder %v113, 113
    %v440 = vsel %vm439, %v428, %v434
    %v441 = vsel %vm439, %v430, %v436
    %v442 = vsel %vm439, %v432, %v438
    %v443 = vsel %vm439, %v422, %v428
    %v444 = vsel %vm439, %v424, %v430
    %v445 = vsel %vm439, %v426, %v432
    %v446 = vsel %vm439, %v416, %v422
    %v447 = vsel %vm439, %v418, %v424
    %v448 = vsel %vm439, %v420, %v426
    %v449 = vsel %vm439, %v434, %v416
    %v450 = vsel %vm439, %v436, %v418
    %v451 = vsel %vm439, %v438, %v420
    %v452 = vlaneseq
    %v453 = vshrl.u32 %v452, 7
    %v454 = vsub.s32 5, %v453
    %v455 = vrot.slane %v84, %v454
    %v456 = vlaneseq
    %v457 = vshrl.u32 %v456, 7
    %v458 = vsub.s32 5, %v457
    %v459 = vrot.slane %v85, %v458
    %v460 = vlaneseq
    %v461 = vshrl.u32 %v460, 7
    %v462 = vsub.s32 5, %v461
    %v463 = vrot.slane %v86, %v462
    %v464 = vlaneseq
    %v465 = vshrl.u32 %v464, 7
    %v466 = vsub.s32 5, %v465
    %v467 = vrot.slane %v87, %v466
    %v468 = vmul.f32 %v446, %v455
    %v469 = vmul.f32 %v443, %v459
    %v470 = vmul.f32 %v440, %v463
    %v471 = vmul.f32 %v449, %v467
    %v472 = vmul.f32 %v447, %v455
    %v473 = vmul.f32 %v444, %v459
    %v474 = vmul.f32 %v441, %v463
    %v475 = vmul.f32 %v450, %v467
    %v476 = vmul.f32 %v448, %v455
    %v477 = vmul.f32 %v445, %v459
    %v478 = vmul.f32 %v442, %v463
    %v479 = vmul.f32 %v451, %v467
    %480 = vrot.lane.b32.xlu0 %v71, 112
    %v481 = vpop.permute.xlu0 %480
    %482 = vrot.lane.b32.xlu0 %v73, 112
    %v483 = vpop.permute.xlu0 %482
    %484 = vrot.lane.b32.xlu0 %v75, 112
    %v485 = vpop.permute.xlu0 %484
    %486 = vrot.lane.b32.xlu0 %v72, 112
    %v487 = vpop.permute.xlu0 %486
    %488 = vrot.lane.b32.xlu0 %v74, 112
    %v489 = vpop.permute.xlu0 %488
    %490 = vrot.lane.b32.xlu0 %v76, 112
    %v491 = vpop.permute.xlu0 %490
    %492 = vrot.lane.b32.xlu0 %v78, 112
    %v493 = vpop.permute.xlu0 %492
    %494 = vrot.lane.b32.xlu0 %v80, 112
    %v495 = vpop.permute.xlu0 %494
    %496 = vrot.lane.b32.xlu0 %v82, 112
    %v497 = vpop.permute.xlu0 %496
    %498 = vrot.lane.b32.xlu0 %v79, 112
    %v499 = vpop.permute.xlu0 %498
    %500 = vrot.lane.b32.xlu0 %v81, 112
    %v501 = vpop.permute.xlu0 %500
    %502 = vrot.lane.b32.xlu0 %v83, 112
    %v503 = vpop.permute.xlu0 %502
    %vm504 = vcmp.lt.s32.totalorder %v113, 112
    %v505 = vsel %vm504, %v493, %v499
    %v506 = vsel %vm504, %v495, %v501
    %v507 = vsel %vm504, %v497, %v503
    %v508 = vsel %vm504, %v487, %v493
    %v509 = vsel %vm504, %v489, %v495
    %v510 = vsel %vm504, %v491, %v497
    %v511 = vsel %vm504, %v481, %v487
    %v512 = vsel %vm504, %v483, %v489
    %v513 = vsel %vm504, %v485, %v491
    %v514 = vsel %vm504, %v499, %v481
    %v515 = vsel %vm504, %v501, %v483
    %v516 = vsel %vm504, %v503, %v485
    %v517 = vlaneseq
    %v518 = vshrl.u32 %v517, 7
    %v519 = vsub.s32 6, %v518
    %v520 = vrot.slane %v84, %v519
    %v521 = vlaneseq
    %v522 = vshrl.u32 %v521, 7
    %v523 = vsub.s32 6, %v522
    %v524 = vrot.slane %v85, %v523
    %v525 = vlaneseq
    %v526 = vshrl.u32 %v525, 7
    %v527 = vsub.s32 6, %v526
    %v528 = vrot.slane %v86, %v527
    %v529 = vlaneseq
    %v530 = vshrl.u32 %v529, 7
    %v531 = vsub.s32 6, %v530
    %v532 = vrot.slane %v87, %v531
    %v533 = vmul.f32 %v511, %v520
    %v534 = vmul.f32 %v508, %v524
    %v535 = vmul.f32 %v505, %v528
    %v536 = vmul.f32 %v514, %v532
    %v537 = vmul.f32 %v512, %v520
    %v538 = vmul.f32 %v509, %v524
    %v539 = vmul.f32 %v506, %v528
    %v540 = vmul.f32 %v515, %v532
    %v541 = vmul.f32 %v513, %v520
    %v542 = vmul.f32 %v510, %v524
    %v543 = vmul.f32 %v507, %v528
    %v544 = vmul.f32 %v516, %v532
    %545 = vrot.lane.b32.xlu0 %v71, 111
    %v546 = vpop.permute.xlu0 %545
    %547 = vrot.lane.b32.xlu0 %v73, 111
    %v548 = vpop.permute.xlu0 %547
    %549 = vrot.lane.b32.xlu0 %v75, 111
    %v550 = vpop.permute.xlu0 %549
    %551 = vrot.lane.b32.xlu0 %v72, 111
    %v552 = vpop.permute.xlu0 %551
    %553 = vrot.lane.b32.xlu0 %v74, 111
    %v554 = vpop.permute.xlu0 %553
    %555 = vrot.lane.b32.xlu0 %v76, 111
    %v556 = vpop.permute.xlu0 %555
    %557 = vrot.lane.b32.xlu0 %v78, 111
    %v558 = vpop.permute.xlu0 %557
    %559 = vrot.lane.b32.xlu0 %v80, 111
    %v560 = vpop.permute.xlu0 %559
    %561 = vrot.lane.b32.xlu0 %v82, 111
    %v562 = vpop.permute.xlu0 %561
    %563 = vrot.lane.b32.xlu0 %v79, 111
    %v564 = vpop.permute.xlu0 %563
    %565 = vrot.lane.b32.xlu0 %v81, 111
    %v566 = vpop.permute.xlu0 %565
    %567 = vrot.lane.b32.xlu0 %v83, 111
    %v568 = vpop.permute.xlu0 %567
    %vm569 = vcmp.lt.s32.totalorder %v113, 111
    %v570 = vsel %vm569, %v558, %v564
    %v571 = vsel %vm569, %v560, %v566
    %v572 = vsel %vm569, %v562, %v568
    %v573 = vsel %vm569, %v552, %v558
    %v574 = vsel %vm569, %v554, %v560
    %v575 = vsel %vm569, %v556, %v562
    %v576 = vsel %vm569, %v546, %v552
    %v577 = vsel %vm569, %v548, %v554
    %v578 = vsel %vm569, %v550, %v556
    %v579 = vsel %vm569, %v564, %v546
    %v580 = vsel %vm569, %v566, %v548
    %v581 = vsel %vm569, %v568, %v550
    %v582 = vlaneseq
    %v583 = vshrl.u32 %v582, 7
    %v584 = vsub.s32 7, %v583
    %v585 = vrot.slane %v84, %v584
    %v586 = vlaneseq
    %v587 = vshrl.u32 %v586, 7
    %v588 = vsub.s32 7, %v587
    %v589 = vrot.slane %v85, %v588
    %v590 = vlaneseq
    %v591 = vshrl.u32 %v590, 7
    %v592 = vsub.s32 7, %v591
    %v593 = vrot.slane %v86, %v592
    %v594 = vlaneseq
    %v595 = vshrl.u32 %v594, 7
    %v596 = vsub.s32 7, %v595
    %v597 = vrot.slane %v87, %v596
    %v598 = vmul.f32 %v576, %v585
    %v599 = vmul.f32 %v573, %v589
    %v600 = vmul.f32 %v570, %v593
    %v601 = vmul.f32 %v579, %v597
    %v602 = vmul.f32 %v577, %v585
    %v603 = vmul.f32 %v574, %v589
    %v604 = vmul.f32 %v571, %v593
    %v605 = vmul.f32 %v580, %v597
    %v606 = vmul.f32 %v578, %v585
    %v607 = vmul.f32 %v575, %v589
    %v608 = vmul.f32 %v572, %v593
    %v609 = vmul.f32 %v581, %v597
    %v610 = vld [vmem:[#allocation5] sm:$0xff]
    %v611 = vld [vmem:[#allocation5 + $0x8] sm:$0xff]
    %v612 = vld [vmem:[#allocation5 + $0x10] sm:$0xff]
    %v613 = vld [vmem:[#allocation5 + $0x18] sm:$0xff]
    %v614 = vld [vmem:[#allocation8] sm:$0xff]
    %v615 = vld [vmem:[#allocation8 + $0x8] sm:$0xff]
    %v616 = vld [vmem:[#allocation8 + $0x10] sm:$0xff]
    %v617 = vld [vmem:[#allocation8 + $0x18] sm:$0xff]
    %v618 = vld [vmem:[#allocation8 + $0x20] sm:$0xff]
    %v619 = vld [vmem:[#allocation8 + $0x28] sm:$0xff]
    %v620 = vld [vmem:[#allocation8 + $0x30] sm:$0xff]
    %v621 = vld [vmem:[#allocation8 + $0x38] sm:$0xff]
    %vm622 = vcmask 719872
    %v624 = vsel %vm622, %v611, 0
    %v627 = vsel %vm622, %v613, 0
    %629 = vmatprep.subr.mxu0 %v144
    %630 = vmatpush1.msra.mxu0 %v143
    %631 = vmatprep.subr.mxu0 %v148
    %632 = vmatpush1.msra.mxu0 %v147
    %633 = vmatprep.subr.mxu0 %v152
    %634 = vmatpush1.msra.mxu0 %v151
    %635 = vmatprep.subr.mxu0 %v209
    %636 = vmatpush1.msra.mxu0 %v208
    %637 = vmatprep.subr.mxu0 %v213
    %638 = vmatpush1.msra.mxu0 %v212
    %639 = vmatprep.subr.mxu0 %v217
    %640 = vmatpush1.msra.mxu0 %v216
    %641 = vmatprep.subr.mxu0 %v274
    %642 = vmatpush1.msra.mxu0 %v273
    %643 = vmatprep.subr.mxu0 %v278
    %644 = vmatpush1.msra.mxu0 %v277
    %645 = vmatprep.subr.mxu0 %v282
    %646 = vmatpush1.msra.mxu0 %v281
    %647 = vmatprep.subr.mxu0 %v339
    %648 = vmatpush1.msra.mxu0 %v338
    %649 = vmatprep.subr.mxu0 %v343
    %650 = vmatpush1.msra.mxu0 %v342
    %651 = vmatprep.subr.mxu0 %v347
    %652 = vmatpush1.msra.mxu0 %v346
    %653 = vmatprep.subr.mxu0 %v72
    %654 = vmatpush1.msra.mxu0 %v71
    %655 = vmatprep.subr.mxu0 %v74
    %656 = vmatpush1.msra.mxu0 %v73
    %657 = vmatprep.subr.mxu0 %v76
    %658 = vmatpush1.msra.mxu0 %v75
    %659 = vmatprep.subr.mxu0 %v404
    %660 = vmatpush1.msra.mxu0 %v403
    %661 = vmatprep.subr.mxu0 %v408
    %662 = vmatpush1.msra.mxu0 %v407
    %663 = vmatprep.subr.mxu0 %v412
    %664 = vmatpush1.msra.mxu0 %v411
    %665 = vmatprep.subr.mxu0 %v469
    %666 = vmatpush1.msra.mxu0 %v468
    %667 = vmatprep.subr.mxu0 %v473
    %668 = vmatpush1.msra.mxu0 %v472
    %669 = vmatprep.subr.mxu0 %v477
    %670 = vmatpush1.msra.mxu0 %v476
    %671 = vmatprep.subr.mxu0 %v534
    %672 = vmatpush1.msra.mxu0 %v533
    %673 = vmatprep.subr.mxu0 %v538
    %674 = vmatpush1.msra.mxu0 %v537
    %675 = vmatprep.subr.mxu0 %v542
    %676 = vmatpush1.msra.mxu0 %v541
    %677 = vmatprep.subr.mxu0 %v599
    %678 = vmatpush1.msra.mxu0 %v598
    %679 = vmatprep.subr.mxu0 %v603
    %680 = vmatpush1.msra.mxu0 %v602
    %681 = vmatprep.subr.mxu0 %v607
    %682 = vmatpush1.msra.mxu0 %v606
    %683 = vmatprep.subr.mxu0 0.0
    %684 = vmatpush1.msra.mxu0 0.0
    %685 = vmatprep.subr.mxu0 0.0
    %686 = vmatpush1.msra.mxu0 0.0
    %687 = vmatprep.subr.mxu0 0.0
    %688 = vmatpush1.msra.mxu0 0.0
    %689 = vmatprep.subr.mxu0 0.0
    %690 = vmatpush1.msra.mxu0 0.0
    %691 = vmatprep.subr.mxu0 0.0
    %692 = vmatpush1.msra.mxu0 0.0
    %693 = vmatprep.mubr.f32.mxu0 %v624
    %694 = vmatmul.mubr.f32.gmra.mrb[0].mxu0 %v610
    %v695 = vpop.f32.mrb[0].mxu0
    %v696 = vadd.f32 %v614, %v695
    %v697 = vpop.f32.mrb[0].mxu0
    %v698 = vadd.f32 %v615, %v697
    %699 = vmatprep.mubr.f32.mxu0 %v627
    %700 = vmatmul.mubr.f32.gmra.mrb[0].mxu0 %v612
    %v701 = vpop.f32.mrb[0].mxu0
    %v702 = vadd.f32 %v618, %v701
    %v703 = vpop.f32.mrb[0].mxu0
    %v704 = vadd.f32 %v619, %v703
    %705 = vdwg.mxu0
    %706 = vmatprep.subr.mxu0 %v146
    %707 = vmatpush1.msra.mxu0 %v145
    %708 = vmatprep.subr.mxu0 %v150
    %709 = vmatpush1.msra.mxu0 %v149
    %710 = vmatprep.subr.mxu0 %v154
    %711 = vmatpush1.msra.mxu0 %v153
    %712 = vmatprep.subr.mxu0 %v211
    %713 = vmatpush1.msra.mxu0 %v210
    %714 = vmatprep.subr.mxu0 %v215
    %715 = vmatpush1.msra.mxu0 %v214
    %716 = vmatprep.subr.mxu0 %v219
    %717 = vmatpush1.msra.mxu0 %v218
    %718 = vmatprep.subr.mxu0 %v276
    %719 = vmatpush1.msra.mxu0 %v275
    %720 = vmatprep.subr.mxu0 %v280
    %721 = vmatpush1.msra.mxu0 %v279
    %722 = vmatprep.subr.mxu0 %v284
    %723 = vmatpush1.msra.mxu0 %v283
    %724 = vmatprep.subr.mxu0 %v341
    %725 = vmatpush1.msra.mxu0 %v340
    %726 = vmatprep.subr.mxu0 %v345
    %727 = vmatpush1.msra.mxu0 %v344
    %728 = vmatprep.subr.mxu0 %v349
    %729 = vmatpush1.msra.mxu0 %v348
    %730 = vmatprep.subr.mxu0 %v79
    %731 = vmatpush1.msra.mxu0 %v78
    %732 = vmatprep.subr.mxu0 %v81
    %733 = vmatpush1.msra.mxu0 %v80
    %734 = vmatprep.subr.mxu0 %v83
    %735 = vmatpush1.msra.mxu0 %v82
    %736 = vmatprep.subr.mxu0 %v406
    %737 = vmatpush1.msra.mxu0 %v405
    %738 = vmatprep.subr.mxu0 %v410
    %739 = vmatpush1.msra.mxu0 %v409
    %740 = vmatprep.subr.mxu0 %v414
    %741 = vmatpush1.msra.mxu0 %v413
    %742 = vmatprep.subr.mxu0 %v471
    %743 = vmatpush1.msra.mxu0 %v470
    %744 = vmatprep.subr.mxu0 %v475
    %745 = vmatpush1.msra.mxu0 %v474
    %746 = vmatprep.subr.mxu0 %v479
    %747 = vmatpush1.msra.mxu0 %v478
    %748 = vmatprep.subr.mxu0 %v536
    %749 = vmatpush1.msra.mxu0 %v535
    %750 = vmatprep.subr.mxu0 %v540
    %751 = vmatpush1.msra.mxu0 %v539
    %752 = vmatprep.subr.mxu0 %v544
    %753 = vmatpush1.msra.mxu0 %v543
    %754 = vmatprep.subr.mxu0 %v601
    %755 = vmatpush1.msra.mxu0 %v600
    %756 = vmatprep.subr.mxu0 %v605
    %757 = vmatpush1.msra.mxu0 %v604
    %758 = vmatprep.subr.mxu0 %v609
    %759 = vmatpush1.msra.mxu0 %v608
    %760 = vmatprep.subr.mxu0 0.0
    %761 = vmatpush1.msra.mxu0 0.0
    %762 = vmatprep.subr.mxu0 0.0
    %763 = vmatpush1.msra.mxu0 0.0
    %764 = vmatprep.subr.mxu0 0.0
    %765 = vmatpush1.msra.mxu0 0.0
    %766 = vmatprep.subr.mxu0 0.0
    %767 = vmatpush1.msra.mxu0 0.0
    %768 = vmatprep.subr.mxu0 0.0
    %769 = vmatpush1.msra.mxu0 0.0
    %770 = vmatprep.mubr.f32.mxu0 %v624
    %771 = vmatmul.mubr.f32.gmra.mrb[0].mxu0 %v610
    %v772 = vpop.f32.mrb[0].mxu0
    %v773 = vadd.f32 %v616, %v772
    %v774 = vpop.f32.mrb[0].mxu0
    %v775 = vadd.f32 %v617, %v774
    %776 = vmatprep.mubr.f32.mxu0 %v627
    %777 = vmatmul.mubr.f32.gmra.mrb[0].mxu0 %v612
    %v778 = vpop.f32.mrb[0].mxu0
    %v779 = vadd.f32 %v620, %v778
    %v780 = vpop.f32.mrb[0].mxu0
    %v781 = vadd.f32 %v621, %v780
    %782 = vdwg.mxu0
    %783 = vst [vmem:[#allocation10] sm:$0xff] %v696
    %784 = vst [vmem:[#allocation10 + $0x8] sm:$0xff] %v698
    %785 = vst [vmem:[#allocation10 + $0x10] sm:$0xff] %v702
    %786 = vst [vmem:[#allocation10 + $0x18] sm:$0xff] %v704
    %s787 = scalar_lea.vmem [#allocation10], 32
    %788 = vst [vmem:[%s787] sm:$0xff] %v773
    %789 = vst [vmem:[%s787 + $0x8] sm:$0xff] %v775
    %790 = vst [vmem:[%s787 + $0x10] sm:$0xff] %v779
    %791 = vst [vmem:[%s787 + $0x18] sm:$0xff] %v781
    // Predicated region
    $region34: #{tpu_custom_call.1} parent=1 // pred_check
      _
    $region35: #{tpu_custom_call.1} parent=1 // pred_check_branch
      %793 = sbr.rel (0) target = $region37
    $region36: #{tpu_custom_call.1} parent=1 // pred_region
      %s795 = ssub.s32 1024, 1024
      %796 = vsyncadd [#allocation4], %s795
      %s797 = sshll.u32 [#allocation10], 4
      %s798 = int_to_ptr.vmem [resolvable:$true] %s797
      %803 = dma.vmem_to_hbm [thread:$0]  %s798, 1024, %s4, [#allocation4], 256, 256, 16
    $region37: #{tpu_custom_call.1} parent=1 // pred_fallthru
      _
    // Predicated region
    $region38: #{tpu_custom_call.1} parent=1 // pred_check
      _
    $region39: #{tpu_custom_call.1} parent=1 // pred_check_branch
      %805 = sbr.rel (0) target = $region41
    $region40: #{tpu_custom_call.1} parent=1 // pred_region
      %806 = dma.done [#allocation4], 1024
    $region41: #{tpu_custom_call.1} parent=1 // pred_fallthru
      _
    %807 = vsyncpa [#allocation3], 1
    %808 = vsyncpa [#allocation6], 1
    %809 = vsyncpa [#allocation9], 1
    %810 = vsyncpa [#allocation4], 1

</llo_original>
